<compile_context>
chip_gen: v5e
topology: v5e:2x2
jax: 0.10.0
libtpu: 0.0.40
codegen_flags: <defaults>
</compile_context>

<pallas_src>
import jax
import jax.numpy as jnp
from jax.experimental import pallas as pl
from jax.experimental.pallas import tpu as pltpu


def _scale_mul_kernel(x_ref, a_ref, o_ref):
    # x_ref: (r_tile, hw_tile); a_ref: (r_tile, 1) broadcasts over the lane axis.
    o_ref[...] = x_ref[...] * a_ref[...]


def _pick_tiles(nc, hw, itemsize, target_bytes=2 << 20):
    """Pick (row_tile, hw_tile) for streaming over an (nc, hw) array.

    Lane (last) dim: multiple of 128 when hw is 128-divisible, else the full axis.
    Sublane dim: multiple of 8 when nc is 8-divisible, else the full axis.
    One block is ~target_bytes so the DMA pipeline stays near the HBM roofline.
    """
    if hw % 128 == 0:
        lane_cap = max(128, (target_bytes // (8 * itemsize)) // 128 * 128)
        hw_tile = min(hw, lane_cap)
    else:
        hw_tile = hw
    rows = max(1, target_bytes // (hw_tile * itemsize))
    if nc % 8 == 0:
        r_tile = min(nc, max(8, (rows // 8) * 8))
    else:
        r_tile = nc
    return r_tile, hw_tile


def _sfam_reweight(x_nchw, a):
    """out = x * a[:, :, None, None] as a lane-dense Pallas streaming multiply."""
    N, C, H, W = x_nchw.shape
    HW = H * W
    NC = N * C

    x2 = x_nchw.reshape(NC, HW)                  # free reshape (NCHW is contiguous)
    a2 = a.astype(x_nchw.dtype).reshape(NC, 1)   # one scale per (batch, channel) row

    r_tile, hw_tile = _pick_tiles(NC, HW, x2.dtype.itemsize)
    grid = (pl.cdiv(NC, r_tile), pl.cdiv(HW, hw_tile))

    out = pl.pallas_call(
        _scale_mul_kernel,
        out_shape=jax.ShapeDtypeStruct((NC, HW), x2.dtype),
        grid_spec=pltpu.PrefetchScalarGridSpec(
            num_scalar_prefetch=0,
            grid=grid,
            in_specs=[
                pl.BlockSpec((r_tile, hw_tile), lambda r, h: (r, h)),
                pl.BlockSpec((r_tile, 1), lambda r, h: (r, 0)),
            ],
            out_specs=pl.BlockSpec((r_tile, hw_tile), lambda r, h: (r, h)),
        ),
        compiler_params=pltpu.CompilerParams(
            dimension_semantics=("parallel", "parallel")),
    )(x2, a2)

    return out.reshape(N, C, H, W)


def _se_attention(x_nchw, w1, b1, w2, b2):
    """sigmoid(fc2(relu(fc1(avgpool(x))))) -> (N, C).

    Tiny (N, C)-sized compute hoisted out of the Pallas hot loop: the 1xC and
    1xCmid matmuls cannot fill an MXU tile, and decoupling the pooling reduction
    from the elementwise pass lets the streaming kernel tile HW/C freely.
    """
    pooled = jnp.mean(x_nchw.astype(jnp.float32), axis=(2, 3))   # (N, C)
    h = jnp.maximum(pooled @ w1.T + b1, 0.0)                     # (N, Cmid)
    return jax.nn.sigmoid(h @ w2.T + b2)                         # (N, C)


def sfam_scale(x_nchw, w1, b1, w2, b2):
    a = _se_attention(x_nchw, w1, b1, w2, b2)
    return _sfam_reweight(x_nchw, a)


@jax.jit
def sfam_forward(xs, w1, b1, w2, b2):
    """Full SFAM forward: list of per-scale feature maps -> list of attended maps."""
    return [sfam_scale(x, w1, b1, w2, b2) for x in xs]


if __name__ == "__main__":
    # Small, SFAM-consistent shapes.
    planes, num_levels, num_scales = 8, 4, 3
    C = planes * num_levels          # 32
    Cmid = C // 16                   # 2  (hard-coded //16 in the PyTorch module)
    N = 2
    spatials = [16, 8, 4]            # per-scale H == W

    key = jax.random.PRNGKey(0)
    keys = jax.random.split(key, 4 + num_scales)

    # Deterministic synthetic parameters (shared across scales, see module note).
    w1 = 0.1 * jax.random.normal(keys[0], (Cmid, C), jnp.float32)   # fc1: (Cmid, C, 1, 1)
    b1 = 0.1 * jax.random.normal(keys[1], (Cmid,), jnp.float32)
    w2 = 0.1 * jax.random.normal(keys[2], (C, Cmid), jnp.float32)   # fc2: (C, Cmid, 1, 1)
    b2 = 0.1 * jax.random.normal(keys[3], (C,), jnp.float32)

    xs = [
        jax.random.normal(keys[4 + i], (N, C, s, s), jnp.float32)
        for i, s in enumerate(spatials)
    ]

    outs = sfam_forward(xs, w1, b1, w2, b2)
    outs = [jax.block_until_ready(o) for o in outs]

    # Pure-JAX reference check of the same SE computation.
    for x, o in zip(xs, outs):
        pooled = jnp.mean(x, axis=(2, 3))                         # (N, C)
        h = jnp.maximum(pooled @ w1.T + b1, 0.0)                  # (N, Cmid)
        a = jax.nn.sigmoid(h @ w2.T + b2)                         # (N, C)
        ref = x * a[:, :, None, None]
        assert o.shape == x.shape and o.dtype == x.dtype
        assert jnp.allclose(o, ref, atol=1e-5, rtol=1e-5), "SFAM kernel mismatch"

    print("KERNEL_OK")
</pallas_src>

<mosaic_0001>
module attributes {stable_mosaic.version = 11 : i64} {
  func.func @_scale_mul_kernel(%arg0: i32, %arg1: i32, %arg2: memref<64x256xf32, #tpu.memory_space<vmem>>, %arg3: memref<64x1xf32, #tpu.memory_space<vmem>>, %arg4: memref<64x256xf32, #tpu.memory_space<vmem>>) attributes {dimension_semantics = [#tpu.dimension_semantics<parallel>, #tpu.dimension_semantics<parallel>], iteration_bounds = array<i64: 1, 1>, scalar_prefetch = 0 : i64, scratch_operands = 0 : i64, tpu.core_type = #tpu.core_type<tc>, window_params = [{transform_indices = @transform_0, window_bounds = array<i64: 64, 256>}, {transform_indices = @transform_1, window_bounds = array<i64: 64, 1>}, {transform_indices = @transform_2, window_bounds = array<i64: 64, 256>}]} {
    %c0 = arith.constant 0 : index
    %c0_0 = arith.constant 0 : index
    %0 = vector.load %arg2[%c0, %c0_0] : memref<64x256xf32, #tpu.memory_space<vmem>>, vector<64x256xf32>
    %c0_1 = arith.constant 0 : index
    %c0_2 = arith.constant 0 : index
    %1 = vector.load %arg3[%c0_1, %c0_2] : memref<64x1xf32, #tpu.memory_space<vmem>>, vector<64x1xf32>
    %2 = vector.broadcast %1 : vector<64x1xf32> to vector<64x256xf32>
    %3 = arith.mulf %0, %2 : vector<64x256xf32>
    %c0_3 = arith.constant 0 : index
    %c0_4 = arith.constant 0 : index
    %4 = vector.load %arg4[%c0_3, %c0_4] : memref<64x256xf32, #tpu.memory_space<vmem>>, vector<64x256xf32>
    tpu.vector_store %arg4[%c0_3, %c0_4], %3 {strides = array<i32>} : memref<64x256xf32, #tpu.memory_space<vmem>>, vector<64x256xf32>,
    return
  }
  func.func @transform_0(%arg0: i32, %arg1: i32) -> (i32, i32) {
    %c0_i32 = arith.constant 0 : i32
    return %arg0, %arg1 : i32, i32
  }
  func.func @transform_1(%arg0: i32, %arg1: i32) -> (i32, i32) {
    %c0_i32 = arith.constant 0 : i32
    %c0_i32_0 = arith.constant 0 : i32
    return %arg0, %c0_i32 : i32, i32
  }
  func.func @transform_2(%arg0: i32, %arg1: i32) -> (i32, i32) {
    %c0_i32 = arith.constant 0 : i32
    return %arg0, %arg1 : i32, i32
  }
}

module attributes {stable_mosaic.version = 11 : i64} {
  func.func @_scale_mul_kernel(%arg0: i32, %arg1: i32, %arg2: memref<64x64xf32, #tpu.memory_space<vmem>>, %arg3: memref<64x1xf32, #tpu.memory_space<vmem>>, %arg4: memref<64x64xf32, #tpu.memory_space<vmem>>) attributes {dimension_semantics = [#tpu.dimension_semantics<parallel>, #tpu.dimension_semantics<parallel>], iteration_bounds = array<i64: 1, 1>, scalar_prefetch = 0 : i64, scratch_operands = 0 : i64, tpu.core_type = #tpu.core_type<tc>, window_params = [{transform_indices = @transform_0, window_bounds = array<i64: 64, 64>}, {transform_indices = @transform_1, window_bounds = array<i64: 64, 1>}, {transform_indices = @transform_2, window_bounds = array<i64: 64, 64>}]} {
    %c0 = arith.constant 0 : index
    %c0_0 = arith.constant 0 : index
    %0 = vector.load %arg2[%c0, %c0_0] : memref<64x64xf32, #tpu.memory_space<vmem>>, vector<64x64xf32>
    %c0_1 = arith.constant 0 : index
    %c0_2 = arith.constant 0 : index
    %1 = vector.load %arg3[%c0_1, %c0_2] : memref<64x1xf32, #tpu.memory_space<vmem>>, vector<64x1xf32>
    %2 = vector.broadcast %1 : vector<64x1xf32> to vector<64x64xf32>
    %3 = arith.mulf %0, %2 : vector<64x64xf32>
    %c0_3 = arith.constant 0 : index
    %c0_4 = arith.constant 0 : index
    %4 = vector.load %arg4[%c0_3, %c0_4] : memref<64x64xf32, #tpu.memory_space<vmem>>, vector<64x64xf32>
    tpu.vector_store %arg4[%c0_3, %c0_4], %3 {strides = array<i32>} : memref<64x64xf32, #tpu.memory_space<vmem>>, vector<64x64xf32>,
    return
  }
  func.func @transform_0(%arg0: i32, %arg1: i32) -> (i32, i32) {
    %c0_i32 = arith.constant 0 : i32
    return %arg0, %arg1 : i32, i32
  }
  func.func @transform_1(%arg0: i32, %arg1: i32) -> (i32, i32) {
    %c0_i32 = arith.constant 0 : i32
    %c0_i32_0 = arith.constant 0 : i32
    return %arg0, %c0_i32 : i32, i32
  }
  func.func @transform_2(%arg0: i32, %arg1: i32) -> (i32, i32) {
    %c0_i32 = arith.constant 0 : i32
    return %arg0, %arg1 : i32, i32
  }
}

module attributes {stable_mosaic.version = 11 : i64} {
  func.func @_scale_mul_kernel(%arg0: i32, %arg1: i32, %arg2: memref<64x16xf32, #tpu.memory_space<vmem>>, %arg3: memref<64x1xf32, #tpu.memory_space<vmem>>, %arg4: memref<64x16xf32, #tpu.memory_space<vmem>>) attributes {dimension_semantics = [#tpu.dimension_semantics<parallel>, #tpu.dimension_semantics<parallel>], iteration_bounds = array<i64: 1, 1>, scalar_prefetch = 0 : i64, scratch_operands = 0 : i64, tpu.core_type = #tpu.core_type<tc>, window_params = [{transform_indices = @transform_0, window_bounds = array<i64: 64, 16>}, {transform_indices = @transform_1, window_bounds = array<i64: 64, 1>}, {transform_indices = @transform_2, window_bounds = array<i64: 64, 16>}]} {
    %c0 = arith.constant 0 : index
    %c0_0 = arith.constant 0 : index
    %0 = vector.load %arg2[%c0, %c0_0] : memref<64x16xf32, #tpu.memory_space<vmem>>, vector<64x16xf32>
    %c0_1 = arith.constant 0 : index
    %c0_2 = arith.constant 0 : index
    %1 = vector.load %arg3[%c0_1, %c0_2] : memref<64x1xf32, #tpu.memory_space<vmem>>, vector<64x1xf32>
    %2 = vector.broadcast %1 : vector<64x1xf32> to vector<64x16xf32>
    %3 = arith.mulf %0, %2 : vector<64x16xf32>
    %c0_3 = arith.constant 0 : index
    %c0_4 = arith.constant 0 : index
    %4 = vector.load %arg4[%c0_3, %c0_4] : memref<64x16xf32, #tpu.memory_space<vmem>>, vector<64x16xf32>
    tpu.vector_store %arg4[%c0_3, %c0_4], %3 {strides = array<i32>} : memref<64x16xf32, #tpu.memory_space<vmem>>, vector<64x16xf32>,
    return
  }
  func.func @transform_0(%arg0: i32, %arg1: i32) -> (i32, i32) {
    %c0_i32 = arith.constant 0 : i32
    return %arg0, %arg1 : i32, i32
  }
  func.func @transform_1(%arg0: i32, %arg1: i32) -> (i32, i32) {
    %c0_i32 = arith.constant 0 : i32
    %c0_i32_0 = arith.constant 0 : i32
    return %arg0, %c0_i32 : i32, i32
  }
  func.func @transform_2(%arg0: i32, %arg1: i32) -> (i32, i32) {
    %c0_i32 = arith.constant 0 : i32
    return %arg0, %arg1 : i32, i32
  }
}

</mosaic_0001>

<llo_original>
// kernel: sfam_forward.3
$region0: #{sfam_forward.3}
  #allocation0 [shape = 'u32[]', space=smem, size = 0x4, offset = 0x4, fixed_abs, tag = 'smem constant byte address 0x4 - core index']
  #allocation1 [shape = 'u32[72,128]{1,0:T(1,128)}', space=vmem, size = 0x9000, scoped, tag = 'internal scratch']
  %s0 = inlined_call_operand.vmem [shape: f32[64,256], index: 0, kind: input, shape index: {}]
  %s1 = inlined_call_operand.vmem [shape: f32[64,1], index: 1, kind: input, shape index: {}]
  %s2 = inlined_call_operand.vmem [shape: f32[64,256], index: 2, kind: output, shape index: {}]
  %s3 = sld [smem:[#allocation0]]
  $region18: #{sfam_forward.3} parent=0
    _
  %s5 = ssub.s32 1, %s3
  %s6 = scalar_select 0, %s5, %s3
  // Predicated region
  $region2: #{sfam_forward.3} parent=0 // pred_check
    _
  $region3: #{sfam_forward.3} parent=0 // pred_check_branch
    %8 = sbr.rel (0) target = $region5
  $region4: #{sfam_forward.3} parent=0 // pred_region
    _
  $region5: #{sfam_forward.3} parent=0 // pred_fallthru
    _
  // Predicated region
  $region6: #{sfam_forward.3} parent=0 // pred_check
    _
  $region7: #{sfam_forward.3} parent=0 // pred_check_branch
    %10 = sbr.rel (0) target = $region9
  $region8: #{sfam_forward.3} parent=0 // pred_region
    _
  $region9: #{sfam_forward.3} parent=0 // pred_fallthru
    _
  %v11 = vld [vmem:[%s0] sm:$0xff]
  %v12 = vld [vmem:[%s0 + $0x8] sm:$0xff]
  %v13 = vld [vmem:[%s0 + $0x10] sm:$0xff]
  %v14 = vld [vmem:[%s0 + $0x18] sm:$0xff]
  %v15 = vld [vmem:[%s0 + $0x20] sm:$0xff]
  %v16 = vld [vmem:[%s0 + $0x28] sm:$0xff]
  %v17 = vld [vmem:[%s0 + $0x30] sm:$0xff]
  %v18 = vld [vmem:[%s0 + $0x38] sm:$0xff]
  %v19 = vld [vmem:[%s0 + $0x40] sm:$0xff]
  %v20 = vld [vmem:[%s0 + $0x48] sm:$0xff]
  %v21 = vld [vmem:[%s0 + $0x50] sm:$0xff]
  %v22 = vld [vmem:[%s0 + $0x58] sm:$0xff]
  %v23 = vld [vmem:[%s0 + $0x60] sm:$0xff]
  %v24 = vld [vmem:[%s0 + $0x68] sm:$0xff]
  %v25 = vld [vmem:[%s0 + $0x70] sm:$0xff]
  %v26 = vld [vmem:[%s0 + $0x78] sm:$0xff]
  %v27 = vld [vmem:[%s1] sm:$0xff]
  %v28 = vld [vmem:[%s1 + $0x8] sm:$0xff]
  %v29 = vld [vmem:[%s1 + $0x10] sm:$0xff]
  %v30 = vld [vmem:[%s1 + $0x18] sm:$0xff]
  %v31 = vld [vmem:[%s1 + $0x20] sm:$0xff]
  %v32 = vld [vmem:[%s1 + $0x28] sm:$0xff]
  %v33 = vld [vmem:[%s1 + $0x30] sm:$0xff]
  %v34 = vld [vmem:[%s1 + $0x38] sm:$0xff]
  %36 = vset.pattern.permute.xlu0 0
  %37 = vperm.xlu0 %36, %v27
  %v38 = vpop.permute.xlu0 %37
  %41 = vset.pattern.permute.xlu0 0
  %42 = vperm.xlu0 %41, %v28
  %v43 = vpop.permute.xlu0 %42
  %46 = vset.pattern.permute.xlu0 0
  %47 = vperm.xlu0 %46, %v29
  %v48 = vpop.permute.xlu0 %47
  %51 = vset.pattern.permute.xlu0 0
  %52 = vperm.xlu0 %51, %v30
  %v53 = vpop.permute.xlu0 %52
  %56 = vset.pattern.permute.xlu0 0
  %57 = vperm.xlu0 %56, %v31
  %v58 = vpop.permute.xlu0 %57
  %61 = vset.pattern.permute.xlu0 0
  %62 = vperm.xlu0 %61, %v32
  %v63 = vpop.permute.xlu0 %62
  %66 = vset.pattern.permute.xlu0 0
  %67 = vperm.xlu0 %66, %v33
  %v68 = vpop.permute.xlu0 %67
  %71 = vset.pattern.permute.xlu0 0
  %72 = vperm.xlu0 %71, %v34
  %v73 = vpop.permute.xlu0 %72
  %v75 = vmul.f32 %v11, %v38
  %v76 = vmul.f32 %v12, %v38
  %v77 = vmul.f32 %v13, %v43
  %v78 = vmul.f32 %v14, %v43
  %v79 = vmul.f32 %v15, %v48
  %v80 = vmul.f32 %v16, %v48
  %v81 = vmul.f32 %v17, %v53
  %v82 = vmul.f32 %v18, %v53
  %v83 = vmul.f32 %v19, %v58
  %v84 = vmul.f32 %v20, %v58
  %v85 = vmul.f32 %v21, %v63
  %v86 = vmul.f32 %v22, %v63
  %v87 = vmul.f32 %v23, %v68
  %v88 = vmul.f32 %v24, %v68
  %v89 = vmul.f32 %v25, %v73
  %v90 = vmul.f32 %v26, %v73
  %91 = vst [vmem:[%s2] sm:$0xff] %v75
  %92 = vst [vmem:[%s2 + $0x8] sm:$0xff] %v76
  %93 = vst [vmem:[%s2 + $0x10] sm:$0xff] %v77
  %94 = vst [vmem:[%s2 + $0x18] sm:$0xff] %v78
  %95 = vst [vmem:[%s2 + $0x20] sm:$0xff] %v79
  %96 = vst [vmem:[%s2 + $0x28] sm:$0xff] %v80
  %97 = vst [vmem:[%s2 + $0x30] sm:$0xff] %v81
  %98 = vst [vmem:[%s2 + $0x38] sm:$0xff] %v82
  %99 = vst [vmem:[%s2 + $0x40] sm:$0xff] %v83
  %100 = vst [vmem:[%s2 + $0x48] sm:$0xff] %v84
  %101 = vst [vmem:[%s2 + $0x50] sm:$0xff] %v85
  %102 = vst [vmem:[%s2 + $0x58] sm:$0xff] %v86
  %103 = vst [vmem:[%s2 + $0x60] sm:$0xff] %v87
  %104 = vst [vmem:[%s2 + $0x68] sm:$0xff] %v88
  %105 = vst [vmem:[%s2 + $0x70] sm:$0xff] %v89
  %106 = vst [vmem:[%s2 + $0x78] sm:$0xff] %v90
  // Predicated region
  $region10: #{sfam_forward.3} parent=0 // pred_check
    _
  $region11: #{sfam_forward.3} parent=0 // pred_check_branch
    %108 = sbr.rel (0) target = $region13
  $region12: #{sfam_forward.3} parent=0 // pred_region
    _
  $region13: #{sfam_forward.3} parent=0 // pred_fallthru
    _
  // Predicated region
  $region14: #{sfam_forward.3} parent=0 // pred_check
    _
  $region15: #{sfam_forward.3} parent=0 // pred_check_branch
    %110 = sbr.rel (0) target = $region17
  $region16: #{sfam_forward.3} parent=0 // pred_region
    _
  $region17: #{sfam_forward.3} parent=0 // pred_fallthru
    _

// kernel: sfam_forward.4
$region0: #{sfam_forward.4}
  #allocation0 [shape = 'u32[]', space=smem, size = 0x4, offset = 0x4, fixed_abs, tag = 'smem constant byte address 0x4 - core index']
  #allocation1 [shape = 'u32[72,128]{1,0:T(1,128)}', space=vmem, size = 0x9000, scoped, tag = 'internal scratch']
  %s0 = inlined_call_operand.vmem [shape: f32[64,64], index: 0, kind: input, shape index: {}]
  %s1 = inlined_call_operand.vmem [shape: f32[64,1], index: 1, kind: input, shape index: {}]
  %s2 = inlined_call_operand.vmem [shape: f32[64,64], index: 2, kind: output, shape index: {}]
  %s3 = sld [smem:[#allocation0]]
  $region18: #{sfam_forward.4} parent=0
    _
  %s5 = ssub.s32 1, %s3
  %s6 = scalar_select 0, %s5, %s3
  // Predicated region
  $region2: #{sfam_forward.4} parent=0 // pred_check
    _
  $region3: #{sfam_forward.4} parent=0 // pred_check_branch
    %8 = sbr.rel (0) target = $region5
  $region4: #{sfam_forward.4} parent=0 // pred_region
    _
  $region5: #{sfam_forward.4} parent=0 // pred_fallthru
    _
  // Predicated region
  $region6: #{sfam_forward.4} parent=0 // pred_check
    _
  $region7: #{sfam_forward.4} parent=0 // pred_check_branch
    %10 = sbr.rel (0) target = $region9
  $region8: #{sfam_forward.4} parent=0 // pred_region
    _
  $region9: #{sfam_forward.4} parent=0 // pred_fallthru
    _
  %v11 = vld [vmem:[%s0] sm:$0xff]
  %v12 = vld [vmem:[%s0 + $0x8] sm:$0xff]
  %v13 = vld [vmem:[%s0 + $0x10] sm:$0xff]
  %v14 = vld [vmem:[%s0 + $0x18] sm:$0xff]
  %v15 = vld [vmem:[%s0 + $0x20] sm:$0xff]
  %v16 = vld [vmem:[%s0 + $0x28] sm:$0xff]
  %v17 = vld [vmem:[%s0 + $0x30] sm:$0xff]
  %v18 = vld [vmem:[%s0 + $0x38] sm:$0xff]
  %v19 = vld [vmem:[%s1] sm:$0xff]
  %v20 = vld [vmem:[%s1 + $0x8] sm:$0xff]
  %v21 = vld [vmem:[%s1 + $0x10] sm:$0xff]
  %v22 = vld [vmem:[%s1 + $0x18] sm:$0xff]
  %v23 = vld [vmem:[%s1 + $0x20] sm:$0xff]
  %v24 = vld [vmem:[%s1 + $0x28] sm:$0xff]
  %v25 = vld [vmem:[%s1 + $0x30] sm:$0xff]
  %v26 = vld [vmem:[%s1 + $0x38] sm:$0xff]
  %28 = vset.pattern.permute.xlu0 0
  %29 = vperm.xlu0 %28, %v19
  %v30 = vpop.permute.xlu0 %29
  %33 = vset.pattern.permute.xlu0 0
  %34 = vperm.xlu0 %33, %v20
  %v35 = vpop.permute.xlu0 %34
  %38 = vset.pattern.permute.xlu0 0
  %39 = vperm.xlu0 %38, %v21
  %v40 = vpop.permute.xlu0 %39
  %43 = vset.pattern.permute.xlu0 0
  %44 = vperm.xlu0 %43, %v22
  %v45 = vpop.permute.xlu0 %44
  %48 = vset.pattern.permute.xlu0 0
  %49 = vperm.xlu0 %48, %v23
  %v50 = vpop.permute.xlu0 %49
  %53 = vset.pattern.permute.xlu0 0
  %54 = vperm.xlu0 %53, %v24
  %v55 = vpop.permute.xlu0 %54
  %58 = vset.pattern.permute.xlu0 0
  %59 = vperm.xlu0 %58, %v25
  %v60 = vpop.permute.xlu0 %59
  %63 = vset.pattern.permute.xlu0 0
  %64 = vperm.xlu0 %63, %v26
  %v65 = vpop.permute.xlu0 %64
  %v67 = vmul.f32 %v11, %v30
  %v68 = vmul.f32 %v12, %v35
  %v69 = vmul.f32 %v13, %v40
  %v70 = vmul.f32 %v14, %v45
  %v71 = vmul.f32 %v15, %v50
  %v72 = vmul.f32 %v16, %v55
  %v73 = vmul.f32 %v17, %v60
  %v74 = vmul.f32 %v18, %v65
  %vm75 = vcmask 523264
  %76 = vst.msk [vmem:[%s2] sm:$0xff] %vm75, %v67
  %77 = vst.msk [vmem:[%s2 + $0x8] sm:$0xff] %vm75, %v68
  %78 = vst.msk [vmem:[%s2 + $0x10] sm:$0xff] %vm75, %v69
  %79 = vst.msk [vmem:[%s2 + $0x18] sm:$0xff] %vm75, %v70
  %80 = vst.msk [vmem:[%s2 + $0x20] sm:$0xff] %vm75, %v71
  %81 = vst.msk [vmem:[%s2 + $0x28] sm:$0xff] %vm75, %v72
  %82 = vst.msk [vmem:[%s2 + $0x30] sm:$0xff] %vm75, %v73
  %83 = vst.msk [vmem:[%s2 + $0x38] sm:$0xff] %vm75, %v74
  // Predicated region
  $region10: #{sfam_forward.4} parent=0 // pred_check
    _
  $region11: #{sfam_forward.4} parent=0 // pred_check_branch
    %85 = sbr.rel (0) target = $region13
  $region12: #{sfam_forward.4} parent=0 // pred_region
    _
  $region13: #{sfam_forward.4} parent=0 // pred_fallthru
    _
  // Predicated region
  $region14: #{sfam_forward.4} parent=0 // pred_check
    _
  $region15: #{sfam_forward.4} parent=0 // pred_check_branch
    %87 = sbr.rel (0) target = $region17
  $region16: #{sfam_forward.4} parent=0 // pred_region
    _
  $region17: #{sfam_forward.4} parent=0 // pred_fallthru
    _

// kernel: sfam_forward.5
$region0: #{sfam_forward.5}
  #allocation0 [shape = 'u32[]', space=smem, size = 0x4, offset = 0x4, fixed_abs, tag = 'smem constant byte address 0x4 - core index']
  #allocation1 [shape = 'u32[72,128]{1,0:T(1,128)}', space=vmem, size = 0x9000, scoped, tag = 'internal scratch']
  %s0 = inlined_call_operand.vmem [shape: f32[64,16], index: 0, kind: input, shape index: {}]
  %s1 = inlined_call_operand.vmem [shape: f32[64,1], index: 1, kind: input, shape index: {}]
  %s2 = inlined_call_operand.vmem [shape: f32[64,16], index: 2, kind: output, shape index: {}]
  %s3 = sld [smem:[#allocation0]]
  $region18: #{sfam_forward.5} parent=0
    _
  %s5 = ssub.s32 1, %s3
  %s6 = scalar_select 0, %s5, %s3
  // Predicated region
  $region2: #{sfam_forward.5} parent=0 // pred_check
    _
  $region3: #{sfam_forward.5} parent=0 // pred_check_branch
    %8 = sbr.rel (0) target = $region5
  $region4: #{sfam_forward.5} parent=0 // pred_region
    _
  $region5: #{sfam_forward.5} parent=0 // pred_fallthru
    _
  // Predicated region
  $region6: #{sfam_forward.5} parent=0 // pred_check
    _
  $region7: #{sfam_forward.5} parent=0 // pred_check_branch
    %10 = sbr.rel (0) target = $region9
  $region8: #{sfam_forward.5} parent=0 // pred_region
    _
  $region9: #{sfam_forward.5} parent=0 // pred_fallthru
    _
  %v11 = vld [vmem:[%s0] sm:$0xff]
  %v12 = vld [vmem:[%s0 + $0x8] sm:$0xff]
  %v13 = vld [vmem:[%s0 + $0x10] sm:$0xff]
  %v14 = vld [vmem:[%s0 + $0x18] sm:$0xff]
  %v15 = vld [vmem:[%s0 + $0x20] sm:$0xff]
  %v16 = vld [vmem:[%s0 + $0x28] sm:$0xff]
  %v17 = vld [vmem:[%s0 + $0x30] sm:$0xff]
  %v18 = vld [vmem:[%s0 + $0x38] sm:$0xff]
  %v19 = vld [vmem:[%s1] sm:$0xff]
  %v20 = vld [vmem:[%s1 + $0x8] sm:$0xff]
  %v21 = vld [vmem:[%s1 + $0x10] sm:$0xff]
  %v22 = vld [vmem:[%s1 + $0x18] sm:$0xff]
  %v23 = vld [vmem:[%s1 + $0x20] sm:$0xff]
  %v24 = vld [vmem:[%s1 + $0x28] sm:$0xff]
  %v25 = vld [vmem:[%s1 + $0x30] sm:$0xff]
  %v26 = vld [vmem:[%s1 + $0x38] sm:$0xff]
  %28 = vset.pattern.permute.xlu0 0
  %29 = vperm.xlu0 %28, %v19
  %v30 = vpop.permute.xlu0 %29
  %33 = vset.pattern.permute.xlu0 0
  %34 = vperm.xlu0 %33, %v20
  %v35 = vpop.permute.xlu0 %34
  %38 = vset.pattern.permute.xlu0 0
  %39 = vperm.xlu0 %38, %v21
  %v40 = vpop.permute.xlu0 %39
  %43 = vset.pattern.permute.xlu0 0
  %44 = vperm.xlu0 %43, %v22
  %v45 = vpop.permute.xlu0 %44
  %48 = vset.pattern.permute.xlu0 0
  %49 = vperm.xlu0 %48, %v23
  %v50 = vpop.permute.xlu0 %49
  %53 = vset.pattern.permute.xlu0 0
  %54 = vperm.xlu0 %53, %v24
  %v55 = vpop.permute.xlu0 %54
  %58 = vset.pattern.permute.xlu0 0
  %59 = vperm.xlu0 %58, %v25
  %v60 = vpop.permute.xlu0 %59
  %63 = vset.pattern.permute.xlu0 0
  %64 = vperm.xlu0 %63, %v26
  %v65 = vpop.permute.xlu0 %64
  %v67 = vmul.f32 %v11, %v30
  %v68 = vmul.f32 %v12, %v35
  %v69 = vmul.f32 %v13, %v40
  %v70 = vmul.f32 %v14, %v45
  %v71 = vmul.f32 %v15, %v50
  %v72 = vmul.f32 %v16, %v55
  %v73 = vmul.f32 %v17, %v60
  %v74 = vmul.f32 %v18, %v65
  %vm75 = vcmask 130048
  %76 = vst.msk [vmem:[%s2] sm:$0xff] %vm75, %v67
  %77 = vst.msk [vmem:[%s2 + $0x8] sm:$0xff] %vm75, %v68
  %78 = vst.msk [vmem:[%s2 + $0x10] sm:$0xff] %vm75, %v69
  %79 = vst.msk [vmem:[%s2 + $0x18] sm:$0xff] %vm75, %v70
  %80 = vst.msk [vmem:[%s2 + $0x20] sm:$0xff] %vm75, %v71
  %81 = vst.msk [vmem:[%s2 + $0x28] sm:$0xff] %vm75, %v72
  %82 = vst.msk [vmem:[%s2 + $0x30] sm:$0xff] %vm75, %v73
  %83 = vst.msk [vmem:[%s2 + $0x38] sm:$0xff] %vm75, %v74
  // Predicated region
  $region10: #{sfam_forward.5} parent=0 // pred_check
    _
  $region11: #{sfam_forward.5} parent=0 // pred_check_branch
    %85 = sbr.rel (0) target = $region13
  $region12: #{sfam_forward.5} parent=0 // pred_region
    _
  $region13: #{sfam_forward.5} parent=0 // pred_fallthru
    _
  // Predicated region
  $region14: #{sfam_forward.5} parent=0 // pred_check
    _
  $region15: #{sfam_forward.5} parent=0 // pred_check_branch
    %87 = sbr.rel (0) target = $region17
  $region16: #{sfam_forward.5} parent=0 // pred_region
    _
  $region17: #{sfam_forward.5} parent=0 // pred_fallthru
    _

</llo_original>
